<compile_context>
chip_gen: v6e
topology: v6e:2x2x1
jax: 0.10.0
libtpu: 0.0.40
codegen_flags: <defaults>
</compile_context>

<pallas_src>
import math

import jax
import jax.numpy as jnp
from jax.experimental import pallas as pl
from jax.experimental.pallas import tpu as pltpu


def _spin_pos_enc_kernel(x_ref, wlin_ref, emb2_ref, w1_ref, b1_ref, w2_ref,
                         pe2_ref, o_ref):
    # Shapes (all static at trace time):
    #   x_ref    : [TM, Cin]      rows = flattened (batch, step)
    #   wlin_ref : [Cin, C]
    #   emb2_ref : [N, C]         node_emb + b_lin (folded in wrapper)
    #   w1_ref   : [C, C], b1_ref: [1, C]
    #   w2_ref   : [C, C]
    #   pe2_ref  : [TM, C]        sinusoidal PE per row + b2 (folded in wrapper)
    #   o_ref    : [TM, N*C]      lane-dense flat output block
    N, C = emb2_ref.shape
    TM = x_ref.shape[0]

    # self.lin : Linear(in_channels, out_channels); bias folded into emb2.
    h = jnp.dot(x_ref[...], wlin_ref[...],
                preferred_element_type=jnp.float32)              # [TM, C]

    # x.unsqueeze(-2) + node_emb, LeakyReLU(0.01). Node-major layout [N,TM,C]
    # so the final flat store per node is a leading-index slice (no lane-dim
    # reshape needed). The add broadcasts; no explicit broadcast_to temporaries.
    h4 = emb2_ref[...][:, None, :] + h[None, :, :]               # [N, TM, C]
    h4 = jnp.where(h4 >= 0, h4, 0.01 * h4)                       # LeakyReLU

    # tsl MLP(C, C, C, n_layers=1, activation='relu'):
    #   Dense = Linear + ReLU, then readout Linear (no activation).
    # Leading-dim merge reshape only (proven lowering), big-M MXU matmuls.
    hh = h4.reshape(N * TM, C)
    y = jnp.dot(hh, w1_ref[...], preferred_element_type=jnp.float32) + b1_ref[...]
    y = jnp.maximum(y, 0.0)                                      # ReLU
    out = jnp.dot(y, w2_ref[...], preferred_element_type=jnp.float32)

    # PositionalEncoding (+ folded readout bias b2), broadcast over nodes.
    out = out.reshape(N, TM, C) + pe2_ref[...][None, :, :]       # [N, TM, C]
    out = out.astype(o_ref.dtype)

    # Lane-dense store: node n occupies lanes [n*C, (n+1)*C) of the flat block.
    for n in range(N):                                           # static unroll
        o_ref[:, n * C:(n + 1) * C] = out[n]


def sinusoidal_pe(length: int, d_model: int) -> jax.Array:
    """Same buffer as tsl's PositionalEncoding (Vaswani et al.)."""
    position = jnp.arange(length, dtype=jnp.float32)[:, None]
    div_term = jnp.exp(jnp.arange(0, d_model, 2, dtype=jnp.float32)
                       * (-math.log(10000.0) / d_model))
    pe = jnp.zeros((length, d_model), jnp.float32)
    pe = pe.at[:, 0::2].set(jnp.sin(position * div_term))
    pe = pe.at[:, 1::2].set(jnp.cos(position * div_term))
    return pe


def spin_positional_encoder(x, params):
    """x: [B, S, Cin] float32 -> [B, S, N, C] float32."""
    B, S, Cin = x.shape
    N, C = params["node_emb"].shape
    M = B * S
    NC = N * C

    # Wrapper-side constant folding (done once by XLA, outside the kernel).
    emb2 = params["node_emb"] + params["b_lin"]         # b_lin folded
    pe = sinusoidal_pe(S, C)                            # [S, C]
    pe2 = jnp.tile(pe, (B, 1)) + params["b2"]           # [M, C], b2 folded

    x_flat = x.reshape(M, Cin)                          # batch folded into M

    # Row tile: whole problem at small sizes, otherwise 256-row tiles.
    if M <= 512:
        TM = M
    else:
        TM = 256
        assert M % TM == 0, "pad batch*steps to a multiple of 256"
    grid = (M // TM,)

    flat = pl.pallas_call(
        _spin_pos_enc_kernel,
        out_shape=jax.ShapeDtypeStruct((M, NC), jnp.float32),
        grid=grid,
        in_specs=[
            pl.BlockSpec((TM, Cin), lambda m: (m, 0)),   # x rows
            pl.BlockSpec((Cin, C), lambda m: (0, 0)),    # w_lin
            pl.BlockSpec((N, C), lambda m: (0, 0)),      # node_emb + b_lin
            pl.BlockSpec((C, C), lambda m: (0, 0)),      # w1
            pl.BlockSpec((1, C), lambda m: (0, 0)),      # b1
            pl.BlockSpec((C, C), lambda m: (0, 0)),      # w2
            pl.BlockSpec((TM, C), lambda m: (m, 0)),     # pe + b2 per row
        ],
        out_specs=pl.BlockSpec((TM, NC), lambda m: (m, 0)),  # lane-dense slab
        compiler_params=pltpu.CompilerParams(
            dimension_semantics=("parallel",),
            vmem_limit_bytes=48 * 1024 * 1024),
    )(x_flat, params["w_lin"], emb2, params["w1"], params["b1"],
      params["w2"], pe2)

    return flat.reshape(B, S, N, C)


def reference(x, params):
    """Pure-JAX reference of the same forward pass."""
    B, S, _ = x.shape
    N, C = params["node_emb"].shape
    pe = sinusoidal_pe(S, C)
    h = x @ params["w_lin"] + params["b_lin"]                   # [B,S,C]
    h4 = h[:, :, None, :] + params["node_emb"][None, None]      # [B,S,N,C]
    h4 = jnp.where(h4 >= 0, h4, 0.01 * h4)
    y = jnp.maximum(h4 @ params["w1"] + params["b1"], 0.0)
    out = y @ params["w2"] + params["b2"]
    return out + pe[None, :, None, :]


def init_params(key, in_channels, out_channels, n_nodes):
    ks = jax.random.split(key, 4)
    C = out_channels

    def lin(k, fan_in, fan_out):
        kw, kb = jax.random.split(k)
        bound = 1.0 / math.sqrt(fan_in)
        w = jax.random.uniform(kw, (fan_in, fan_out), jnp.float32, -bound, bound)
        b = jax.random.uniform(kb, (1, fan_out), jnp.float32, -bound, bound)
        return w, b

    w_lin, b_lin = lin(ks[0], in_channels, C)
    w1, b1 = lin(ks[1], C, C)
    w2, b2 = lin(ks[2], C, C)
    node_emb = jax.random.uniform(ks[3], (n_nodes, C), jnp.float32, -1.0, 1.0)
    return dict(w_lin=w_lin, b_lin=b_lin, w1=w1, b1=b1, w2=w2, b2=b2,
                node_emb=node_emb)


if __name__ == "__main__":
    B, S, N, C_IN, C_OUT = 2, 8, 16, 4, 32

    key = jax.random.PRNGKey(0)
    k_x, k_p = jax.random.split(key)
    x = jax.random.normal(k_x, (B, S, C_IN), jnp.float32)
    params = init_params(k_p, C_IN, C_OUT, N)

    out = spin_positional_encoder(x, params)
    out = jax.block_until_ready(out)

    ref = reference(x, params)
    assert out.shape == (B, S, N, C_OUT)
    assert jnp.allclose(out, ref, atol=1e-5, rtol=1e-5), "mismatch vs JAX reference"

    print("KERNEL_OK")
</pallas_src>

<mosaic_0001>
module attributes {stable_mosaic.version = 11 : i64} {
  func.func @_spin_pos_enc_kernel(%arg0: i32, %arg1: memref<16x4xf32, #tpu.memory_space<vmem>>, %arg2: memref<4x32xf32, #tpu.memory_space<vmem>>, %arg3: memref<16x32xf32, #tpu.memory_space<vmem>>, %arg4: memref<32x32xf32, #tpu.memory_space<vmem>>, %arg5: memref<1x32xf32, #tpu.memory_space<vmem>>, %arg6: memref<32x32xf32, #tpu.memory_space<vmem>>, %arg7: memref<16x32xf32, #tpu.memory_space<vmem>>, %arg8: memref<16x512xf32, #tpu.memory_space<vmem>>) attributes {dimension_semantics = [#tpu.dimension_semantics<parallel>], iteration_bounds = array<i64: 1>, scalar_prefetch = 0 : i64, scratch_operands = 0 : i64, tpu.core_type = #tpu.core_type<tc>, window_params = [{transform_indices = @transform_0, window_bounds = array<i64: 16, 4>}, {pipeline_mode = #tpu.pipeline_mode<synchronous>, transform_indices = @transform_1, window_bounds = array<i64: 4, 32>}, {pipeline_mode = #tpu.pipeline_mode<synchronous>, transform_indices = @transform_2, window_bounds = array<i64: 16, 32>}, {pipeline_mode = #tpu.pipeline_mode<synchronous>, transform_indices = @transform_3, window_bounds = array<i64: 32, 32>}, {pipeline_mode = #tpu.pipeline_mode<synchronous>, transform_indices = @transform_4, window_bounds = array<i64: 1, 32>}, {pipeline_mode = #tpu.pipeline_mode<synchronous>, transform_indices = @transform_5, window_bounds = array<i64: 32, 32>}, {transform_indices = @transform_6, window_bounds = array<i64: 16, 32>}, {transform_indices = @transform_7, window_bounds = array<i64: 16, 512>}]} {
    %c0 = arith.constant 0 : index
    %c0_0 = arith.constant 0 : index
    %0 = vector.load %arg1[%c0, %c0_0] : memref<16x4xf32, #tpu.memory_space<vmem>>, vector<16x4xf32>
    %c0_1 = arith.constant 0 : index
    %c0_2 = arith.constant 0 : index
    %1 = vector.load %arg2[%c0_1, %c0_2] : memref<4x32xf32, #tpu.memory_space<vmem>>, vector<4x32xf32>
    %cst = arith.constant dense<0.000000e+00> : vector<16x32xf32>
    %2 = tpu.matmul %0, %1, %cst {dimension_numbers = #tpu.dot_dimension_numbers<[1], [0], [0], [1], [0, 0, 1, 1], [], []>} : vector<16x4xf32>, vector<4x32xf32>, vector<16x32xf32> -> vector<16x32xf32>
    %c0_3 = arith.constant 0 : index
    %c0_4 = arith.constant 0 : index
    %3 = vector.load %arg3[%c0_3, %c0_4] : memref<16x32xf32, #tpu.memory_space<vmem>>, vector<16x32xf32>
    %4 = vector.shape_cast %3 : vector<16x32xf32> to vector<16x1x32xf32>
    %5 = vector.shape_cast %2 : vector<16x32xf32> to vector<1x16x32xf32>
    %6 = vector.broadcast %4 : vector<16x1x32xf32> to vector<16x16x32xf32>
    %7 = vector.broadcast %5 : vector<1x16x32xf32> to vector<16x16x32xf32>
    %8 = arith.addf %6, %7 : vector<16x16x32xf32>
    %cst_5 = arith.constant 0.000000e+00 : f32
    %9 = vector.broadcast %cst_5 : f32 to vector<16x16x32xf32>
    %10 = arith.cmpf oge, %8, %9 : vector<16x16x32xf32>
    %cst_6 = arith.constant 0.00999999977 : f32
    %11 = vector.broadcast %cst_6 : f32 to vector<16x16x32xf32>
    %12 = arith.mulf %11, %8 : vector<16x16x32xf32>
    %13 = arith.select %10, %8, %12 : vector<16x16x32xi1>, vector<16x16x32xf32>
    %14 = vector.shape_cast %13 : vector<16x16x32xf32> to vector<256x32xf32>
    %c0_7 = arith.constant 0 : index
    %c0_8 = arith.constant 0 : index
    %15 = vector.load %arg4[%c0_7, %c0_8] : memref<32x32xf32, #tpu.memory_space<vmem>>, vector<32x32xf32>
    %cst_9 = arith.constant dense<0.000000e+00> : vector<256x32xf32>
    %16 = tpu.matmul %14, %15, %cst_9 {dimension_numbers = #tpu.dot_dimension_numbers<[1], [0], [0], [1], [0, 0, 1, 1], [], []>} : vector<256x32xf32>, vector<32x32xf32>, vector<256x32xf32> -> vector<256x32xf32>
    %c0_10 = arith.constant 0 : index
    %c0_11 = arith.constant 0 : index
    %17 = vector.load %arg5[%c0_10, %c0_11] : memref<1x32xf32, #tpu.memory_space<vmem>>, vector<1x32xf32>
    %18 = vector.broadcast %17 : vector<1x32xf32> to vector<256x32xf32>
    %19 = arith.addf %16, %18 : vector<256x32xf32>
    %cst_12 = arith.constant 0.000000e+00 : f32
    %20 = vector.broadcast %cst_12 : f32 to vector<256x32xf32>
    %21 = arith.maximumf %19, %20 : vector<256x32xf32>
    %c0_13 = arith.constant 0 : index
    %c0_14 = arith.constant 0 : index
    %22 = vector.load %arg6[%c0_13, %c0_14] : memref<32x32xf32, #tpu.memory_space<vmem>>, vector<32x32xf32>
    %cst_15 = arith.constant dense<0.000000e+00> : vector<256x32xf32>
    %23 = tpu.matmul %21, %22, %cst_15 {dimension_numbers = #tpu.dot_dimension_numbers<[1], [0], [0], [1], [0, 0, 1, 1], [], []>} : vector<256x32xf32>, vector<32x32xf32>, vector<256x32xf32> -> vector<256x32xf32>
    %24 = vector.shape_cast %23 : vector<256x32xf32> to vector<16x16x32xf32>
    %c0_16 = arith.constant 0 : index
    %c0_17 = arith.constant 0 : index
    %25 = vector.load %arg7[%c0_16, %c0_17] : memref<16x32xf32, #tpu.memory_space<vmem>>, vector<16x32xf32>
    %26 = vector.shape_cast %25 : vector<16x32xf32> to vector<1x16x32xf32>
    %27 = vector.broadcast %26 : vector<1x16x32xf32> to vector<16x16x32xf32>
    %28 = arith.addf %24, %27 : vector<16x16x32xf32>
    %29 = vector.extract_strided_slice %28 {offsets = [0, 0, 0], sizes = [1, 16, 32], strides = [1, 1, 1]} : vector<16x16x32xf32> to vector<1x16x32xf32>
    %30 = vector.shape_cast %29 : vector<1x16x32xf32> to vector<16x32xf32>
    %c0_18 = arith.constant 0 : index
    %c0_19 = arith.constant 0 : index
    %31 = vector.load %arg8[%c0_18, %c0_19] : memref<16x512xf32, #tpu.memory_space<vmem>>, vector<16x32xf32>
    tpu.vector_store %arg8[%c0_18, %c0_19], %30 {strides = array<i32>} : memref<16x512xf32, #tpu.memory_space<vmem>>, vector<16x32xf32>,
    %32 = vector.extract_strided_slice %28 {offsets = [1, 0, 0], sizes = [1, 16, 32], strides = [1, 1, 1]} : vector<16x16x32xf32> to vector<1x16x32xf32>
    %33 = vector.shape_cast %32 : vector<1x16x32xf32> to vector<16x32xf32>
    %c0_20 = arith.constant 0 : index
    %c32 = arith.constant 32 : index
    %34 = vector.load %arg8[%c0_20, %c32] : memref<16x512xf32, #tpu.memory_space<vmem>>, vector<16x32xf32>
    tpu.vector_store %arg8[%c0_20, %c32], %33 {strides = array<i32>} : memref<16x512xf32, #tpu.memory_space<vmem>>, vector<16x32xf32>,
    %35 = vector.extract_strided_slice %28 {offsets = [2, 0, 0], sizes = [1, 16, 32], strides = [1, 1, 1]} : vector<16x16x32xf32> to vector<1x16x32xf32>
    %36 = vector.shape_cast %35 : vector<1x16x32xf32> to vector<16x32xf32>
    %c0_21 = arith.constant 0 : index
    %c64 = arith.constant 64 : index
    %37 = vector.load %arg8[%c0_21, %c64] : memref<16x512xf32, #tpu.memory_space<vmem>>, vector<16x32xf32>
    tpu.vector_store %arg8[%c0_21, %c64], %36 {strides = array<i32>} : memref<16x512xf32, #tpu.memory_space<vmem>>, vector<16x32xf32>,
    %38 = vector.extract_strided_slice %28 {offsets = [3, 0, 0], sizes = [1, 16, 32], strides = [1, 1, 1]} : vector<16x16x32xf32> to vector<1x16x32xf32>
    %39 = vector.shape_cast %38 : vector<1x16x32xf32> to vector<16x32xf32>
    %c0_22 = arith.constant 0 : index
    %c96 = arith.constant 96 : index
    %40 = vector.load %arg8[%c0_22, %c96] : memref<16x512xf32, #tpu.memory_space<vmem>>, vector<16x32xf32>
    tpu.vector_store %arg8[%c0_22, %c96], %39 {strides = array<i32>} : memref<16x512xf32, #tpu.memory_space<vmem>>, vector<16x32xf32>,
    %41 = vector.extract_strided_slice %28 {offsets = [4, 0, 0], sizes = [1, 16, 32], strides = [1, 1, 1]} : vector<16x16x32xf32> to vector<1x16x32xf32>
    %42 = vector.shape_cast %41 : vector<1x16x32xf32> to vector<16x32xf32>
    %c0_23 = arith.constant 0 : index
    %c128 = arith.constant 128 : index
    %43 = vector.load %arg8[%c0_23, %c128] : memref<16x512xf32, #tpu.memory_space<vmem>>, vector<16x32xf32>
    tpu.vector_store %arg8[%c0_23, %c128], %42 {strides = array<i32>} : memref<16x512xf32, #tpu.memory_space<vmem>>, vector<16x32xf32>,
    %44 = vector.extract_strided_slice %28 {offsets = [5, 0, 0], sizes = [1, 16, 32], strides = [1, 1, 1]} : vector<16x16x32xf32> to vector<1x16x32xf32>
    %45 = vector.shape_cast %44 : vector<1x16x32xf32> to vector<16x32xf32>
    %c0_24 = arith.constant 0 : index
    %c160 = arith.constant 160 : index
    %46 = vector.load %arg8[%c0_24, %c160] : memref<16x512xf32, #tpu.memory_space<vmem>>, vector<16x32xf32>
    tpu.vector_store %arg8[%c0_24, %c160], %45 {strides = array<i32>} : memref<16x512xf32, #tpu.memory_space<vmem>>, vector<16x32xf32>,
    %47 = vector.extract_strided_slice %28 {offsets = [6, 0, 0], sizes = [1, 16, 32], strides = [1, 1, 1]} : vector<16x16x32xf32> to vector<1x16x32xf32>
    %48 = vector.shape_cast %47 : vector<1x16x32xf32> to vector<16x32xf32>
    %c0_25 = arith.constant 0 : index
    %c192 = arith.constant 192 : index
    %49 = vector.load %arg8[%c0_25, %c192] : memref<16x512xf32, #tpu.memory_space<vmem>>, vector<16x32xf32>
    tpu.vector_store %arg8[%c0_25, %c192], %48 {strides = array<i32>} : memref<16x512xf32, #tpu.memory_space<vmem>>, vector<16x32xf32>,
    %50 = vector.extract_strided_slice %28 {offsets = [7, 0, 0], sizes = [1, 16, 32], strides = [1, 1, 1]} : vector<16x16x32xf32> to vector<1x16x32xf32>
    %51 = vector.shape_cast %50 : vector<1x16x32xf32> to vector<16x32xf32>
    %c0_26 = arith.constant 0 : index
    %c224 = arith.constant 224 : index
    %52 = vector.load %arg8[%c0_26, %c224] : memref<16x512xf32, #tpu.memory_space<vmem>>, vector<16x32xf32>
    tpu.vector_store %arg8[%c0_26, %c224], %51 {strides = array<i32>} : memref<16x512xf32, #tpu.memory_space<vmem>>, vector<16x32xf32>,
    %53 = vector.extract_strided_slice %28 {offsets = [8, 0, 0], sizes = [1, 16, 32], strides = [1, 1, 1]} : vector<16x16x32xf32> to vector<1x16x32xf32>
    %54 = vector.shape_cast %53 : vector<1x16x32xf32> to vector<16x32xf32>
    %c0_27 = arith.constant 0 : index
    %c256 = arith.constant 256 : index
    %55 = vector.load %arg8[%c0_27, %c256] : memref<16x512xf32, #tpu.memory_space<vmem>>, vector<16x32xf32>
    tpu.vector_store %arg8[%c0_27, %c256], %54 {strides = array<i32>} : memref<16x512xf32, #tpu.memory_space<vmem>>, vector<16x32xf32>,
    %56 = vector.extract_strided_slice %28 {offsets = [9, 0, 0], sizes = [1, 16, 32], strides = [1, 1, 1]} : vector<16x16x32xf32> to vector<1x16x32xf32>
    %57 = vector.shape_cast %56 : vector<1x16x32xf32> to vector<16x32xf32>
    %c0_28 = arith.constant 0 : index
    %c288 = arith.constant 288 : index
    %58 = vector.load %arg8[%c0_28, %c288] : memref<16x512xf32, #tpu.memory_space<vmem>>, vector<16x32xf32>
    tpu.vector_store %arg8[%c0_28, %c288], %57 {strides = array<i32>} : memref<16x512xf32, #tpu.memory_space<vmem>>, vector<16x32xf32>,
    %59 = vector.extract_strided_slice %28 {offsets = [10, 0, 0], sizes = [1, 16, 32], strides = [1, 1, 1]} : vector<16x16x32xf32> to vector<1x16x32xf32>
    %60 = vector.shape_cast %59 : vector<1x16x32xf32> to vector<16x32xf32>
    %c0_29 = arith.constant 0 : index
    %c320 = arith.constant 320 : index
    %61 = vector.load %arg8[%c0_29, %c320] : memref<16x512xf32, #tpu.memory_space<vmem>>, vector<16x32xf32>
    tpu.vector_store %arg8[%c0_29, %c320], %60 {strides = array<i32>} : memref<16x512xf32, #tpu.memory_space<vmem>>, vector<16x32xf32>,
    %62 = vector.extract_strided_slice %28 {offsets = [11, 0, 0], sizes = [1, 16, 32], strides = [1, 1, 1]} : vector<16x16x32xf32> to vector<1x16x32xf32>
    %63 = vector.shape_cast %62 : vector<1x16x32xf32> to vector<16x32xf32>
    %c0_30 = arith.constant 0 : index
    %c352 = arith.constant 352 : index
    %64 = vector.load %arg8[%c0_30, %c352] : memref<16x512xf32, #tpu.memory_space<vmem>>, vector<16x32xf32>
    tpu.vector_store %arg8[%c0_30, %c352], %63 {strides = array<i32>} : memref<16x512xf32, #tpu.memory_space<vmem>>, vector<16x32xf32>,
    %65 = vector.extract_strided_slice %28 {offsets = [12, 0, 0], sizes = [1, 16, 32], strides = [1, 1, 1]} : vector<16x16x32xf32> to vector<1x16x32xf32>
    %66 = vector.shape_cast %65 : vector<1x16x32xf32> to vector<16x32xf32>
    %c0_31 = arith.constant 0 : index
    %c384 = arith.constant 384 : index
    %67 = vector.load %arg8[%c0_31, %c384] : memref<16x512xf32, #tpu.memory_space<vmem>>, vector<16x32xf32>
    tpu.vector_store %arg8[%c0_31, %c384], %66 {strides = array<i32>} : memref<16x512xf32, #tpu.memory_space<vmem>>, vector<16x32xf32>,
    %68 = vector.extract_strided_slice %28 {offsets = [13, 0, 0], sizes = [1, 16, 32], strides = [1, 1, 1]} : vector<16x16x32xf32> to vector<1x16x32xf32>
    %69 = vector.shape_cast %68 : vector<1x16x32xf32> to vector<16x32xf32>
    %c0_32 = arith.constant 0 : index
    %c416 = arith.constant 416 : index
    %70 = vector.load %arg8[%c0_32, %c416] : memref<16x512xf32, #tpu.memory_space<vmem>>, vector<16x32xf32>
    tpu.vector_store %arg8[%c0_32, %c416], %69 {strides = array<i32>} : memref<16x512xf32, #tpu.memory_space<vmem>>, vector<16x32xf32>,
    %71 = vector.extract_strided_slice %28 {offsets = [14, 0, 0], sizes = [1, 16, 32], strides = [1, 1, 1]} : vector<16x16x32xf32> to vector<1x16x32xf32>
    %72 = vector.shape_cast %71 : vector<1x16x32xf32> to vector<16x32xf32>
    %c0_33 = arith.constant 0 : index
    %c448 = arith.constant 448 : index
    %73 = vector.load %arg8[%c0_33, %c448] : memref<16x512xf32, #tpu.memory_space<vmem>>, vector<16x32xf32>
    tpu.vector_store %arg8[%c0_33, %c448], %72 {strides = array<i32>} : memref<16x512xf32, #tpu.memory_space<vmem>>, vector<16x32xf32>,
    %74 = vector.extract_strided_slice %28 {offsets = [15, 0, 0], sizes = [1, 16, 32], strides = [1, 1, 1]} : vector<16x16x32xf32> to vector<1x16x32xf32>
    %75 = vector.shape_cast %74 : vector<1x16x32xf32> to vector<16x32xf32>
    %c0_34 = arith.constant 0 : index
    %c480 = arith.constant 480 : index
    %76 = vector.load %arg8[%c0_34, %c480] : memref<16x512xf32, #tpu.memory_space<vmem>>, vector<16x32xf32>
    tpu.vector_store %arg8[%c0_34, %c480], %75 {strides = array<i32>} : memref<16x512xf32, #tpu.memory_space<vmem>>, vector<16x32xf32>,
    return
  }
  func.func @transform_0(%arg0: i32) -> (i32, i32) {
    %c0_i32 = arith.constant 0 : i32
    %c0_i32_0 = arith.constant 0 : i32
    return %arg0, %c0_i32 : i32, i32
  }
  func.func @transform_1(%arg0: i32) -> (i32, i32) {
    %c0_i32 = arith.constant 0 : i32
    %c0_i32_0 = arith.constant 0 : i32
    %c0_i32_1 = arith.constant 0 : i32
    return %c0_i32, %c0_i32_0 : i32, i32
  }
  func.func @transform_2(%arg0: i32) -> (i32, i32) {
    %c0_i32 = arith.constant 0 : i32
    %c0_i32_0 = arith.constant 0 : i32
    %c0_i32_1 = arith.constant 0 : i32
    return %c0_i32, %c0_i32_0 : i32, i32
  }
  func.func @transform_3(%arg0: i32) -> (i32, i32) {
    %c0_i32 = arith.constant 0 : i32
    %c0_i32_0 = arith.constant 0 : i32
    %c0_i32_1 = arith.constant 0 : i32
    return %c0_i32, %c0_i32_0 : i32, i32
  }
  func.func @transform_4(%arg0: i32) -> (i32, i32) {
    %c0_i32 = arith.constant 0 : i32
    %c0_i32_0 = arith.constant 0 : i32
    %c0_i32_1 = arith.constant 0 : i32
    return %c0_i32, %c0_i32_0 : i32, i32
  }
  func.func @transform_5(%arg0: i32) -> (i32, i32) {
    %c0_i32 = arith.constant 0 : i32
    %c0_i32_0 = arith.constant 0 : i32
    %c0_i32_1 = arith.constant 0 : i32
    return %c0_i32, %c0_i32_0 : i32, i32
  }
  func.func @transform_6(%arg0: i32) -> (i32, i32) {
    %c0_i32 = arith.constant 0 : i32
    %c0_i32_0 = arith.constant 0 : i32
    return %arg0, %c0_i32 : i32, i32
  }
  func.func @transform_7(%arg0: i32) -> (i32, i32) {
    %c0_i32 = arith.constant 0 : i32
    %c0_i32_0 = arith.constant 0 : i32
    return %arg0, %c0_i32 : i32, i32
  }
}

</mosaic_0001>

<llo_original>
// kernel: tpu_custom_call.1
$region0: #{tpu_custom_call.1}
  #allocation0 [shape = 'u32[]', space=smem, size = 0x4, offset = 0x4, fixed_abs, tag = 'smem constant byte address 0x4 - core index']
  #allocation1 [shape = 'u32[144,128]{1,0:T(1,128)}', space=vmem, size = 0x12000, scoped, tag = 'internal scratch']
  %s0 = inlined_call_operand.vmem [shape: f32[16,4], index: 0, kind: input, shape index: {}]
  %s1 = inlined_call_operand.vmem [shape: f32[4,32], index: 1, kind: input, shape index: {}]
  %s2 = inlined_call_operand.vmem [shape: f32[16,32], index: 2, kind: input, shape index: {}]
  %s3 = inlined_call_operand.hbm [shape: f32[32,32], index: 3, kind: input, shape index: {}]
  %s4 = inlined_call_operand.vmem [shape: f32[1,32], index: 4, kind: input, shape index: {}]
  %s5 = inlined_call_operand.hbm [shape: f32[32,32], index: 5, kind: input, shape index: {}]
  %s6 = inlined_call_operand.hbm [shape: f32[16,32], index: 6, kind: input, shape index: {}]
  %s7 = inlined_call_operand.hbm [shape: f32[16,512], index: 7, kind: output, shape index: {}]
  %s8 = sld [smem:[#allocation0]]
  $region50: #{tpu_custom_call.1} parent=0
    _
  %s10 = ssub.s32 1, %s8
  %s11 = scalar_select 0, %s10, %s8
  $region1: #{tpu_custom_call.1} parent=0
    #allocation2 [shape = 'u8[16384]{0}', space=vmem, size = 0x4000, scoped, tag = 'input window, operand 3, single buffered']
    #allocation3 [shape = 's32[1]{0}', space=sflag, size = 0x4, scoped, tag = 'scoped memory for tpu_custom_call.1']
    #allocation4 [shape = 's32[1]{0}', space=sflag, size = 0x4, scoped, tag = 'scoped memory for tpu_custom_call.1']
    #allocation5 [shape = 'u8[16384]{0}', space=vmem, size = 0x4000, scoped, tag = 'input window, operand 5, single buffered']
    #allocation6 [shape = 's32[1]{0}', space=sflag, size = 0x4, scoped, tag = 'scoped memory for tpu_custom_call.1']
    #allocation7 [shape = 'u8[8192]{0}', space=vmem, size = 0x2000, scoped, tag = 'input window, operand 6, single buffered']
    #allocation8 [shape = 'u8[32768]{0}', space=vmem, size = 0x8000, scoped, tag = 'output window, operand 0, single buffered']
    %12 = vsyncpa [#allocation3], 0
    %13 = vsyncpa [#allocation6], 0
    %14 = vsyncpa [#allocation4], 0
    // Predicated region
    $region2: #{tpu_custom_call.1} parent=1 // pred_check
      _
    $region3: #{tpu_custom_call.1} parent=1 // pred_check_branch
      %16 = sbr.rel (0) target = $region5
    $region4: #{tpu_custom_call.1} parent=1 // pred_region
      _
    $region5: #{tpu_custom_call.1} parent=1 // pred_fallthru
      _
    // Predicated region
    $region6: #{tpu_custom_call.1} parent=1 // pred_check
      _
    $region7: #{tpu_custom_call.1} parent=1 // pred_check_branch
      %18 = sbr.rel (0) target = $region9
    $region8: #{tpu_custom_call.1} parent=1 // pred_region
      _
    $region9: #{tpu_custom_call.1} parent=1 // pred_fallthru
      _
    // Predicated region
    $region10: #{tpu_custom_call.1} parent=1 // pred_check
      _
    $region11: #{tpu_custom_call.1} parent=1 // pred_check_branch
      %20 = sbr.rel (0) target = $region13
    $region12: #{tpu_custom_call.1} parent=1 // pred_region
      _
    $region13: #{tpu_custom_call.1} parent=1 // pred_fallthru
      _
    // Predicated region
    $region14: #{tpu_custom_call.1} parent=1 // pred_check
      _
    $region15: #{tpu_custom_call.1} parent=1 // pred_check_branch
      %22 = sbr.rel (0) target = $region17
    $region16: #{tpu_custom_call.1} parent=1 // pred_region
      %s24 = ssub.s32 512, 512
      %25 = vsyncadd [#allocation3], %s24
      %s26 = sshll.u32 [#allocation2], 4
      %s27 = int_to_ptr.vmem [resolvable:$true] %s26
      %32 = dma.hbm_to_vmem [thread:$0]  %s3, 512, %s27, [#allocation3], 128, 128, 8
    $region17: #{tpu_custom_call.1} parent=1 // pred_fallthru
      _
    // Predicated region
    $region18: #{tpu_custom_call.1} parent=1 // pred_check
      _
    $region19: #{tpu_custom_call.1} parent=1 // pred_check_branch
      %34 = sbr.rel (0) target = $region21
    $region20: #{tpu_custom_call.1} parent=1 // pred_region
      _
    $region21: #{tpu_custom_call.1} parent=1 // pred_fallthru
      _
    // Predicated region
    $region22: #{tpu_custom_call.1} parent=1 // pred_check
      _
    $region23: #{tpu_custom_call.1} parent=1 // pred_check_branch
      %36 = sbr.rel (0) target = $region25
    $region24: #{tpu_custom_call.1} parent=1 // pred_region
      %s38 = ssub.s32 512, 512
      %39 = vsyncadd [#allocation6], %s38
      %s40 = sshll.u32 [#allocation5], 4
      %s41 = int_to_ptr.vmem [resolvable:$true] %s40
      %46 = dma.hbm_to_vmem [thread:$0]  %s5, 512, %s41, [#allocation6], 128, 128, 8
    $region25: #{tpu_custom_call.1} parent=1 // pred_fallthru
      _
    // Predicated region
    $region26: #{tpu_custom_call.1} parent=1 // pred_check
      _
    $region27: #{tpu_custom_call.1} parent=1 // pred_check_branch
      %48 = sbr.rel (0) target = $region29
    $region28: #{tpu_custom_call.1} parent=1 // pred_region
      %s50 = ssub.s32 256, 256
      %51 = vsyncadd [#allocation6], %s50
      %s52 = sshll.u32 [#allocation7], 4
      %s53 = int_to_ptr.vmem [resolvable:$true] %s52
      %58 = dma.hbm_to_vmem [thread:$0]  %s6, 256, %s53, [#allocation6], 128, 128, 8
    $region29: #{tpu_custom_call.1} parent=1 // pred_fallthru
      _
    // Predicated region
    $region30: #{tpu_custom_call.1} parent=1 // pred_check
      _
    $region31: #{tpu_custom_call.1} parent=1 // pred_check_branch
      %60 = sbr.rel (0) target = $region33
    $region32: #{tpu_custom_call.1} parent=1 // pred_region
      %61 = dma.done [#allocation3], 512
    $region33: #{tpu_custom_call.1} parent=1 // pred_fallthru
      _
    // Predicated region
    $region34: #{tpu_custom_call.1} parent=1 // pred_check
      _
    $region35: #{tpu_custom_call.1} parent=1 // pred_check_branch
      %63 = sbr.rel (0) target = $region37
    $region36: #{tpu_custom_call.1} parent=1 // pred_region
      %64 = dma.done [#allocation6], 512
    $region37: #{tpu_custom_call.1} parent=1 // pred_fallthru
      _
    // Predicated region
    $region38: #{tpu_custom_call.1} parent=1 // pred_check
      _
    $region39: #{tpu_custom_call.1} parent=1 // pred_check_branch
      %66 = sbr.rel (0) target = $region41
    $region40: #{tpu_custom_call.1} parent=1 // pred_region
      %67 = dma.done [#allocation6], 256
    $region41: #{tpu_custom_call.1} parent=1 // pred_fallthru
      _
    %v68 = vld [vmem:[%s0] sm:$0xff]
    %v69 = vld [vmem:[%s0 + $0x8] sm:$0xff]
    %v70 = vld [vmem:[%s1] sm:$0xf]
    %vm71 = vcmask 31744
    %v73 = vsel %vm71, %v68, 0
    %v76 = vsel %vm71, %v69, 0
    %vm78 = vcmask 1043456
    %v80 = vsel %vm78, %v70, 0
    %82 = vmatprep.subr.mxu0 0.0
    %83 = vmatpush1.msra.mxu0 0.0
    %84 = vmatprep.subr.mxu0 0.0
    %85 = vmatpush1.msra.mxu0 0.0
    %86 = vmatprep.subr.mxu0 0.0
    %87 = vmatpush1.msra.mxu0 0.0
    %88 = vmatprep.subr.mxu0 0.0
    %89 = vmatpush1.msra.mxu0 0.0
    %90 = vmatprep.subr.mxu0 0.0
    %91 = vmatpush1.msra.mxu0 0.0
    %92 = vmatprep.subr.mxu0 0.0
    %93 = vmatpush1.msra.mxu0 0.0
    %94 = vmatprep.subr.mxu0 0.0
    %95 = vmatpush1.msra.mxu0 0.0
    %96 = vmatprep.subr.mxu0 0.0
    %97 = vmatpush1.msra.mxu0 0.0
    %98 = vmatprep.subr.mxu0 0.0
    %99 = vmatpush1.msra.mxu0 0.0
    %100 = vmatprep.subr.mxu0 0.0
    %101 = vmatpush1.msra.mxu0 0.0
    %102 = vmatprep.subr.mxu0 0.0
    %103 = vmatpush1.msra.mxu0 0.0
    %104 = vmatprep.subr.mxu0 0.0
    %105 = vmatpush1.msra.mxu0 0.0
    %106 = vmatprep.subr.mxu0 0.0
    %107 = vmatpush1.msra.mxu0 0.0
    %108 = vmatprep.subr.mxu0 0.0
    %109 = vmatpush1.msra.mxu0 0.0
    %110 = vmatprep.subr.mxu0 0.0
    %111 = vmatpush1.msra.mxu0 0.0
    %112 = vmatprep.subr.mxu0 0.0
    %113 = vmatpush1.msra.mxu0 %v80
    %114 = vmatprep.subr.mxu0 0.0
    %115 = vmatpush2.msra.mxu0 0.0
    %116 = vmatprep.subr.mxu0 0.0
    %117 = vmatpush2.msra.mxu0 0.0
    %118 = vmatprep.subr.mxu0 0.0
    %119 = vmatpush2.msra.mxu0 0.0
    %120 = vmatprep.subr.mxu0 0.0
    %121 = vmatpush2.msra.mxu0 0.0
    %122 = vmatprep.subr.mxu0 0.0
    %123 = vmatpush2.msra.mxu0 0.0
    %124 = vmatprep.subr.mxu0 0.0
    %125 = vmatpush2.msra.mxu0 0.0
    %126 = vmatprep.subr.mxu0 0.0
    %127 = vmatpush2.msra.mxu0 0.0
    %128 = vmatprep.subr.mxu0 0.0
    %129 = vmatpush2.msra.mxu0 0.0
    %130 = vmatprep.subr.mxu0 0.0
    %131 = vmatpush2.msra.mxu0 0.0
    %132 = vmatprep.subr.mxu0 0.0
    %133 = vmatpush2.msra.mxu0 0.0
    %134 = vmatprep.subr.mxu0 0.0
    %135 = vmatpush2.msra.mxu0 0.0
    %136 = vmatprep.subr.mxu0 0.0
    %137 = vmatpush2.msra.mxu0 0.0
    %138 = vmatprep.subr.mxu0 0.0
    %139 = vmatpush2.msra.mxu0 0.0
    %140 = vmatprep.subr.mxu0 0.0
    %141 = vmatpush2.msra.mxu0 0.0
    %142 = vmatprep.subr.mxu0 0.0
    %143 = vmatpush2.msra.mxu0 0.0
    %144 = vmatprep.subr.mxu0 0.0
    %145 = vmatpush2.msra.mxu0 0.0
    %146 = vmatprep.mubr.f32.mxu0 0.0
    %147 = vmatmul.mubr.f32.gmra.mxu0 %v73
    %v148 = vpop.f32.mrf.mxu0
    %v149 = vadd.f32 0.0, %v148
    %v150 = vpop.f32.mrf.mxu0
    %151 = vmatprep.mubr.f32.mxu0 0.0
    %152 = vmatmul.mubr.f32.gmra.mxu0 %v76
    %v153 = vpop.f32.mrf.mxu0
    %v154 = vadd.f32 0.0, %v153
    %v155 = vpop.f32.mrf.mxu0
    %156 = vdwg.mxu0
    %v157 = vld [vmem:[%s2] sm:$0xff]
    %v158 = vld [vmem:[%s2 + $0x8] sm:$0xff]
    %v161 = vcombine.high %v157, %v157
    %v163 = vunpack.c.l.s4 1966171168
    %v164 = vunpack.c.0.s8 %v163
    %v165 = vlaneseq
    %v166 = vshrl.u32 %v165, 7
    %v167 = vsub.s32 %v164, %v166
    %v168 = vrot.slane %v157, %v167
    %v170 = vunpack.c.l.s4 1966171168
    %v171 = vunpack.c.0.s8 %v170
    %v172 = vlaneseq
    %v173 = vshrl.u32 %v172, 7
    %v174 = vsub.s32 %v171, %v173
    %v175 = vrot.slane %v161, %v174
    %v176 = vcombine.high %v168, %v168
    %v177 = vcombine.high %v175, %v175
    %v179 = vunpack.c.l.s4 1966171168
    %v180 = vunpack.c.0.s8 %v179
    %v181 = vlaneseq
    %v182 = vshrl.u32 %v181, 7
    %v183 = vsub.s32 %v180, %v182
    %v184 = vrot.slane %v168, %v183
    %v186 = vunpack.c.l.s4 1966171168
    %v187 = vunpack.c.0.s8 %v186
    %v188 = vlaneseq
    %v189 = vshrl.u32 %v188, 7
    %v190 = vsub.s32 %v187, %v189
    %v191 = vrot.slane %v175, %v190
    %v193 = vunpack.c.l.s4 1966171168
    %v194 = vunpack.c.0.s8 %v193
    %v195 = vlaneseq
    %v196 = vshrl.u32 %v195, 7
    %v197 = vsub.s32 %v194, %v196
    %v198 = vrot.slane %v176, %v197
    %v200 = vunpack.c.l.s4 1966171168
    %v201 = vunpack.c.0.s8 %v200
    %v202 = vlaneseq
    %v203 = vshrl.u32 %v202, 7
    %v204 = vsub.s32 %v201, %v203
    %v205 = vrot.slane %v177, %v204
    %v206 = vcombine.high %v184, %v184
    %v207 = vcombine.high %v191, %v191
    %v208 = vcombine.high %v198, %v198
    %v209 = vcombine.high %v205, %v205
    %v210 = vcombine.high %v158, %v158
    %v212 = vunpack.c.l.s4 1966171168
    %v213 = vunpack.c.0.s8 %v212
    %v214 = vlaneseq
    %v215 = vshrl.u32 %v214, 7
    %v216 = vsub.s32 %v213, %v215
    %v217 = vrot.slane %v158, %v216
    %v219 = vunpack.c.l.s4 1966171168
    %v220 = vunpack.c.0.s8 %v219
    %v221 = vlaneseq
    %v222 = vshrl.u32 %v221, 7
    %v223 = vsub.s32 %v220, %v222
    %v224 = vrot.slane %v210, %v223
    %v225 = vcombine.high %v217, %v217
    %v226 = vcombine.high %v224, %v224
    %v228 = vunpack.c.l.s4 1966171168
    %v229 = vunpack.c.0.s8 %v228
    %v230 = vlaneseq
    %v231 = vshrl.u32 %v230, 7
    %v232 = vsub.s32 %v229, %v231
    %v233 = vrot.slane %v217, %v232
    %v235 = vunpack.c.l.s4 1966171168
    %v236 = vunpack.c.0.s8 %v235
    %v237 = vlaneseq
    %v238 = vshrl.u32 %v237, 7
    %v239 = vsub.s32 %v236, %v238
    %v240 = vrot.slane %v224, %v239
    %v242 = vunpack.c.l.s4 1966171168
    %v243 = vunpack.c.0.s8 %v242
    %v244 = vlaneseq
    %v245 = vshrl.u32 %v244, 7
    %v246 = vsub.s32 %v243, %v245
    %v247 = vrot.slane %v225, %v246
    %v249 = vunpack.c.l.s4 1966171168
    %v250 = vunpack.c.0.s8 %v249
    %v251 = vlaneseq
    %v252 = vshrl.u32 %v251, 7
    %v253 = vsub.s32 %v250, %v252
    %v254 = vrot.slane %v226, %v253
    %v255 = vcombine.high %v233, %v233
    %v256 = vcombine.high %v240, %v240
    %v257 = vcombine.high %v247, %v247
    %v258 = vcombine.high %v254, %v254
    %v259 = vlaneseq
    %v260 = vshrl.u32 %v259, 7
    %v261 = vsub.s32 0, %v260
    %v262 = vrot.slane %v184, %v261
    %v263 = vlaneseq
    %v264 = vshrl.u32 %v263, 7
    %v265 = vsub.s32 0, %v264
    %v266 = vrot.slane %v198, %v265
    %v267 = vlaneseq
    %v268 = vshrl.u32 %v267, 7
    %v269 = vsub.s32 0, %v268
    %v270 = vrot.slane %v206, %v269
    %v271 = vlaneseq
    %v272 = vshrl.u32 %v271, 7
    %v273 = vsub.s32 0, %v272
    %v274 = vrot.slane %v208, %v273
    %v275 = vlaneseq
    %v276 = vshrl.u32 %v275, 7
    %v277 = vsub.s32 0, %v276
    %v278 = vrot.slane %v191, %v277
    %v279 = vlaneseq
    %v280 = vshrl.u32 %v279, 7
    %v281 = vsub.s32 0, %v280
    %v282 = vrot.slane %v205, %v281
    %v283 = vlaneseq
    %v284 = vshrl.u32 %v283, 7
    %v285 = vsub.s32 0, %v284
    %v286 = vrot.slane %v207, %v285
    %v287 = vlaneseq
    %v288 = vshrl.u32 %v287, 7
    %v289 = vsub.s32 0, %v288
    %v290 = vrot.slane %v209, %v289
    %v291 = vlaneseq
    %v292 = vshrl.u32 %v291, 7
    %v293 = vsub.s32 0, %v292
    %v294 = vrot.slane %v233, %v293
    %v295 = vlaneseq
    %v296 = vshrl.u32 %v295, 7
    %v297 = vsub.s32 0, %v296
    %v298 = vrot.slane %v247, %v297
    %v299 = vlaneseq
    %v300 = vshrl.u32 %v299, 7
    %v301 = vsub.s32 0, %v300
    %v302 = vrot.slane %v255, %v301
    %v303 = vlaneseq
    %v304 = vshrl.u32 %v303, 7
    %v305 = vsub.s32 0, %v304
    %v306 = vrot.slane %v257, %v305
    %v307 = vlaneseq
    %v308 = vshrl.u32 %v307, 7
    %v309 = vsub.s32 0, %v308
    %v310 = vrot.slane %v240, %v309
    %v311 = vlaneseq
    %v312 = vshrl.u32 %v311, 7
    %v313 = vsub.s32 0, %v312
    %v314 = vrot.slane %v254, %v313
    %v315 = vlaneseq
    %v316 = vshrl.u32 %v315, 7
    %v317 = vsub.s32 0, %v316
    %v318 = vrot.slane %v256, %v317
    %v319 = vlaneseq
    %v320 = vshrl.u32 %v319, 7
    %v321 = vsub.s32 0, %v320
    %v322 = vrot.slane %v258, %v321
    %v339 = vadd.f32 %v262, %v149
    %v340 = vadd.f32 %v262, %v154
    %v341 = vadd.f32 %v266, %v149
    %v342 = vadd.f32 %v266, %v154
    %v343 = vadd.f32 %v270, %v149
    %v344 = vadd.f32 %v270, %v154
    %v345 = vadd.f32 %v274, %v149
    %v346 = vadd.f32 %v274, %v154
    %v347 = vadd.f32 %v278, %v149
    %v348 = vadd.f32 %v278, %v154
    %v349 = vadd.f32 %v282, %v149
    %v350 = vadd.f32 %v282, %v154
    %v351 = vadd.f32 %v286, %v149
    %v352 = vadd.f32 %v286, %v154
    %v353 = vadd.f32 %v290, %v149
    %v354 = vadd.f32 %v290, %v154
    %v355 = vadd.f32 %v294, %v149
    %v356 = vadd.f32 %v294, %v154
    %v357 = vadd.f32 %v298, %v149
    %v358 = vadd.f32 %v298, %v154
    %v359 = vadd.f32 %v302, %v149
    %v360 = vadd.f32 %v302, %v154
    %v361 = vadd.f32 %v306, %v149
    %v362 = vadd.f32 %v306, %v154
    %v363 = vadd.f32 %v310, %v149
    %v364 = vadd.f32 %v310, %v154
    %v365 = vadd.f32 %v314, %v149
    %v366 = vadd.f32 %v314, %v154
    %v367 = vadd.f32 %v318, %v149
    %v368 = vadd.f32 %v318, %v154
    %v369 = vadd.f32 %v322, %v149
    %v370 = vadd.f32 %v322, %v154
    %vm371 = vcmp.ge.f32.partialorder %v339, 0.0
    %vm372 = vcmp.ge.f32.partialorder %v340, 0.0
    %vm373 = vcmp.ge.f32.partialorder %v341, 0.0
    %vm374 = vcmp.ge.f32.partialorder %v342, 0.0
    %vm375 = vcmp.ge.f32.partialorder %v343, 0.0
    %vm376 = vcmp.ge.f32.partialorder %v344, 0.0
    %vm377 = vcmp.ge.f32.partialorder %v345, 0.0
    %vm378 = vcmp.ge.f32.partialorder %v346, 0.0
    %vm379 = vcmp.ge.f32.partialorder %v347, 0.0
    %vm380 = vcmp.ge.f32.partialorder %v348, 0.0
    %vm381 = vcmp.ge.f32.partialorder %v349, 0.0
    %vm382 = vcmp.ge.f32.partialorder %v350, 0.0
    %vm383 = vcmp.ge.f32.partialorder %v351, 0.0
    %vm384 = vcmp.ge.f32.partialorder %v352, 0.0
    %vm385 = vcmp.ge.f32.partialorder %v353, 0.0
    %vm386 = vcmp.ge.f32.partialorder %v354, 0.0
    %vm387 = vcmp.ge.f32.partialorder %v355, 0.0
    %vm388 = vcmp.ge.f32.partialorder %v356, 0.0
    %vm389 = vcmp.ge.f32.partialorder %v357, 0.0
    %vm390 = vcmp.ge.f32.partialorder %v358, 0.0
    %vm391 = vcmp.ge.f32.partialorder %v359, 0.0
    %vm392 = vcmp.ge.f32.partialorder %v360, 0.0
    %vm393 = vcmp.ge.f32.partialorder %v361, 0.0
    %vm394 = vcmp.ge.f32.partialorder %v362, 0.0
    %vm395 = vcmp.ge.f32.partialorder %v363, 0.0
    %vm396 = vcmp.ge.f32.partialorder %v364, 0.0
    %vm397 = vcmp.ge.f32.partialorder %v365, 0.0
    %vm398 = vcmp.ge.f32.partialorder %v366, 0.0
    %vm399 = vcmp.ge.f32.partialorder %v367, 0.0
    %vm400 = vcmp.ge.f32.partialorder %v368, 0.0
    %vm401 = vcmp.ge.f32.partialorder %v369, 0.0
    %vm402 = vcmp.ge.f32.partialorder %v370, 0.0
    %v403 = vmul.f32 %v339, 0.01
    %v404 = vmul.f32 %v340, 0.01
    %v405 = vmul.f32 %v341, 0.01
    %v406 = vmul.f32 %v342, 0.01
    %v407 = vmul.f32 %v343, 0.01
    %v408 = vmul.f32 %v344, 0.01
    %v409 = vmul.f32 %v345, 0.01
    %v410 = vmul.f32 %v346, 0.01
    %v411 = vmul.f32 %v347, 0.01
    %v412 = vmul.f32 %v348, 0.01
    %v413 = vmul.f32 %v349, 0.01
    %v414 = vmul.f32 %v350, 0.01
    %v415 = vmul.f32 %v351, 0.01
    %v416 = vmul.f32 %v352, 0.01
    %v417 = vmul.f32 %v353, 0.01
    %v418 = vmul.f32 %v354, 0.01
    %v419 = vmul.f32 %v355, 0.01
    %v420 = vmul.f32 %v356, 0.01
    %v421 = vmul.f32 %v357, 0.01
    %v422 = vmul.f32 %v358, 0.01
    %v423 = vmul.f32 %v359, 0.01
    %v424 = vmul.f32 %v360, 0.01
    %v425 = vmul.f32 %v361, 0.01
    %v426 = vmul.f32 %v362, 0.01
    %v427 = vmul.f32 %v363, 0.01
    %v428 = vmul.f32 %v364, 0.01
    %v429 = vmul.f32 %v365, 0.01
    %v430 = vmul.f32 %v366, 0.01
    %v431 = vmul.f32 %v367, 0.01
    %v432 = vmul.f32 %v368, 0.01
    %v433 = vmul.f32 %v369, 0.01
    %v434 = vmul.f32 %v370, 0.01
    %v435 = vsel %vm371, %v339, %v403
    %v436 = vsel %vm372, %v340, %v404
    %v437 = vsel %vm373, %v341, %v405
    %v438 = vsel %vm374, %v342, %v406
    %v439 = vsel %vm375, %v343, %v407
    %v440 = vsel %vm376, %v344, %v408
    %v441 = vsel %vm377, %v345, %v409
    %v442 = vsel %vm378, %v346, %v410
    %v443 = vsel %vm379, %v347, %v411
    %v444 = vsel %vm380, %v348, %v412
    %v445 = vsel %vm381, %v349, %v413
    %v446 = vsel %vm382, %v350, %v414
    %v447 = vsel %vm383, %v351, %v415
    %v448 = vsel %vm384, %v352, %v416
    %v449 = vsel %vm385, %v353, %v417
    %v450 = vsel %vm386, %v354, %v418
    %v451 = vsel %vm387, %v355, %v419
    %v452 = vsel %vm388, %v356, %v420
    %v453 = vsel %vm389, %v357, %v421
    %v454 = vsel %vm390, %v358, %v422
    %v455 = vsel %vm391, %v359, %v423
    %v456 = vsel %vm392, %v360, %v424
    %v457 = vsel %vm393, %v361, %v425
    %v458 = vsel %vm394, %v362, %v426
    %v459 = vsel %vm395, %v363, %v427
    %v460 = vsel %vm396, %v364, %v428
    %v461 = vsel %vm397, %v365, %v429
    %v462 = vsel %vm398, %v366, %v430
    %v463 = vsel %vm399, %v367, %v431
    %v464 = vsel %vm400, %v368, %v432
    %v465 = vsel %vm401, %v369, %v433
    %v466 = vsel %vm402, %v370, %v434
    %v467 = vld [vmem:[#allocation2] sm:$0xff]
    %v468 = vld [vmem:[#allocation2 + $0x8] sm:$0xff]
    %v469 = vld [vmem:[#allocation2 + $0x10] sm:$0xff]
    %v470 = vld [vmem:[#allocation2 + $0x18] sm:$0xff]
    %v471 = vld [vmem:[%s4] sm:$0x1]
    %v473 = vlaneseq
    %v474 = vshrl.u32 %v473, 7
    %v475 = vsub.s32 0, %v474
    %v476 = vrot.slane %v471, %v475
    %vm478 = vcmask 261120
    %v480 = vsel %vm478, %v435, 0
    %v483 = vsel %vm478, %v436, 0
    %v486 = vsel %vm478, %v437, 0
    %v489 = vsel %vm478, %v438, 0
    %v492 = vsel %vm478, %v439, 0
    %v495 = vsel %vm478, %v440, 0
    %v498 = vsel %vm478, %v441, 0
    %v501 = vsel %vm478, %v442, 0
    %v504 = vsel %vm478, %v443, 0
    %v507 = vsel %vm478, %v444, 0
    %v510 = vsel %vm478, %v445, 0
    %v513 = vsel %vm478, %v446, 0
    %v516 = vsel %vm478, %v447, 0
    %v519 = vsel %vm478, %v448, 0
    %v522 = vsel %vm478, %v449, 0
    %v525 = vsel %vm478, %v450, 0
    %v528 = vsel %vm478, %v451, 0
    %v531 = vsel %vm478, %v452, 0
    %v534 = vsel %vm478, %v453, 0
    %v537 = vsel %vm478, %v454, 0
    %v540 = vsel %vm478, %v455, 0
    %v543 = vsel %vm478, %v456, 0
    %v546 = vsel %vm478, %v457, 0
    %v549 = vsel %vm478, %v458, 0
    %v552 = vsel %vm478, %v459, 0
    %v555 = vsel %vm478, %v460, 0
    %v558 = vsel %vm478, %v461, 0
    %v561 = vsel %vm478, %v462, 0
    %v564 = vsel %vm478, %v463, 0
    %v567 = vsel %vm478, %v464, 0
    %v570 = vsel %vm478, %v465, 0
    %v573 = vsel %vm478, %v466, 0
    %575 = vmatprep.subr.mxu0 0.0
    %576 = vmatpush1.msra.mxu0 0.0
    %577 = vmatprep.subr.mxu0 0.0
    %578 = vmatpush1.msra.mxu0 0.0
    %579 = vmatprep.subr.mxu0 0.0
    %580 = vmatpush1.msra.mxu0 0.0
    %581 = vmatprep.subr.mxu0 0.0
    %582 = vmatpush1.msra.mxu0 0.0
    %583 = vmatprep.subr.mxu0 0.0
    %584 = vmatpush1.msra.mxu0 0.0
    %585 = vmatprep.subr.mxu0 0.0
    %586 = vmatpush1.msra.mxu0 0.0
    %587 = vmatprep.subr.mxu0 0.0
    %588 = vmatpush1.msra.mxu0 0.0
    %589 = vmatprep.subr.mxu0 0.0
    %590 = vmatpush1.msra.mxu0 0.0
    %591 = vmatprep.subr.mxu0 0.0
    %592 = vmatpush1.msra.mxu0 0.0
    %593 = vmatprep.subr.mxu0 0.0
    %594 = vmatpush1.msra.mxu0 0.0
    %595 = vmatprep.subr.mxu0 0.0
    %596 = vmatpush1.msra.mxu0 0.0
    %597 = vmatprep.subr.mxu0 0.0
    %598 = vmatpush1.msra.mxu0 0.0
    %599 = vmatprep.subr.mxu0 0.0
    %600 = vmatpush1.msra.mxu0 %v470
    %601 = vmatprep.subr.mxu0 0.0
    %602 = vmatpush1.msra.mxu0 %v469
    %603 = vmatprep.subr.mxu0 0.0
    %604 = vmatpush1.msra.mxu0 %v468
    %605 = vmatprep.subr.mxu0 0.0
    %606 = vmatpush1.msra.mxu0 %v467
    %607 = vmatprep.subr.mxu0 0.0
    %608 = vmatpush2.msra.mxu0 0.0
    %609 = vmatprep.subr.mxu0 0.0
    %610 = vmatpush2.msra.mxu0 0.0
    %611 = vmatprep.subr.mxu0 0.0
    %612 = vmatpush2.msra.mxu0 0.0
    %613 = vmatprep.subr.mxu0 0.0
    %614 = vmatpush2.msra.mxu0 0.0
    %615 = vmatprep.subr.mxu0 0.0
    %616 = vmatpush2.msra.mxu0 0.0
    %617 = vmatprep.subr.mxu0 0.0
    %618 = vmatpush2.msra.mxu0 0.0
    %619 = vmatprep.subr.mxu0 0.0
    %620 = vmatpush2.msra.mxu0 0.0
    %621 = vmatprep.subr.mxu0 0.0
    %622 = vmatpush2.msra.mxu0 0.0
    %623 = vmatprep.subr.mxu0 0.0
    %624 = vmatpush2.msra.mxu0 0.0
    %625 = vmatprep.subr.mxu0 0.0
    %626 = vmatpush2.msra.mxu0 0.0
    %627 = vmatprep.subr.mxu0 0.0
    %628 = vmatpush2.msra.mxu0 0.0
    %629 = vmatprep.subr.mxu0 0.0
    %630 = vmatpush2.msra.mxu0 0.0
    %631 = vmatprep.subr.mxu0 0.0
    %632 = vmatpush2.msra.mxu0 0.0
    %633 = vmatprep.subr.mxu0 0.0
    %634 = vmatpush2.msra.mxu0 0.0
    %635 = vmatprep.subr.mxu0 0.0
    %636 = vmatpush2.msra.mxu0 0.0
    %637 = vmatprep.subr.mxu0 0.0
    %638 = vmatpush2.msra.mxu0 0.0
    %639 = vmatprep.mubr.f32.mxu0 0.0
    %640 = vmatmul.mubr.f32.gmra.mxu0 %v480
    %v641 = vpop.f32.mrf.mxu0
    %v642 = vadd.f32 %v476, %v641
    %v643 = vpop.f32.mrf.mxu0
    %644 = vmatprep.mubr.f32.mxu0 0.0
    %645 = vmatmul.mubr.f32.gmra.mxu0 %v483
    %v646 = vpop.f32.mrf.mxu0
    %v647 = vadd.f32 %v476, %v646
    %v648 = vpop.f32.mrf.mxu0
    %649 = vmatprep.mubr.f32.mxu0 0.0
    %650 = vmatmul.mubr.f32.gmra.mxu0 %v486
    %v651 = vpop.f32.mrf.mxu0
    %v652 = vadd.f32 %v476, %v651
    %v653 = vpop.f32.mrf.mxu0
    %654 = vmatprep.mubr.f32.mxu0 0.0
    %655 = vmatmul.mubr.f32.gmra.mxu0 %v489
    %v656 = vpop.f32.mrf.mxu0
    %v657 = vadd.f32 %v476, %v656
    %v658 = vpop.f32.mrf.mxu0
    %659 = vmatprep.mubr.f32.mxu0 0.0
    %660 = vmatmul.mubr.f32.gmra.mxu0 %v492
    %v661 = vpop.f32.mrf.mxu0
    %v662 = vadd.f32 %v476, %v661
    %v663 = vpop.f32.mrf.mxu0
    %664 = vmatprep.mubr.f32.mxu0 0.0
    %665 = vmatmul.mubr.f32.gmra.mxu0 %v495
    %v666 = vpop.f32.mrf.mxu0
    %v667 = vadd.f32 %v476, %v666
    %v668 = vpop.f32.mrf.mxu0
    %669 = vmatprep.mubr.f32.mxu0 0.0
    %670 = vmatmul.mubr.f32.gmra.mxu0 %v498
    %v671 = vpop.f32.mrf.mxu0
    %v672 = vadd.f32 %v476, %v671
    %v673 = vpop.f32.mrf.mxu0
    %674 = vmatprep.mubr.f32.mxu0 0.0
    %675 = vmatmul.mubr.f32.gmra.mxu0 %v501
    %v676 = vpop.f32.mrf.mxu0
    %v677 = vadd.f32 %v476, %v676
    %v678 = vpop.f32.mrf.mxu0
    %679 = vmatprep.mubr.f32.mxu0 0.0
    %680 = vmatmul.mubr.f32.gmra.mxu0 %v504
    %v681 = vpop.f32.mrf.mxu0
    %v682 = vadd.f32 %v476, %v681
    %v683 = vpop.f32.mrf.mxu0
    %684 = vmatprep.mubr.f32.mxu0 0.0
    %685 = vmatmul.mubr.f32.gmra.mxu0 %v507
    %v686 = vpop.f32.mrf.mxu0
    %v687 = vadd.f32 %v476, %v686
    %v688 = vpop.f32.mrf.mxu0
    %689 = vmatprep.mubr.f32.mxu0 0.0
    %690 = vmatmul.mubr.f32.gmra.mxu0 %v510
    %v691 = vpop.f32.mrf.mxu0
    %v692 = vadd.f32 %v476, %v691
    %v693 = vpop.f32.mrf.mxu0
    %694 = vmatprep.mubr.f32.mxu0 0.0
    %695 = vmatmul.mubr.f32.gmra.mxu0 %v513
    %v696 = vpop.f32.mrf.mxu0
    %v697 = vadd.f32 %v476, %v696
    %v698 = vpop.f32.mrf.mxu0
    %699 = vmatprep.mubr.f32.mxu0 0.0
    %700 = vmatmul.mubr.f32.gmra.mxu0 %v516
    %v701 = vpop.f32.mrf.mxu0
    %v702 = vadd.f32 %v476, %v701
    %v703 = vpop.f32.mrf.mxu0
    %704 = vmatprep.mubr.f32.mxu0 0.0
    %705 = vmatmul.mubr.f32.gmra.mxu0 %v519
    %v706 = vpop.f32.mrf.mxu0
    %v707 = vadd.f32 %v476, %v706
    %v708 = vpop.f32.mrf.mxu0
    %709 = vmatprep.mubr.f32.mxu0 0.0
    %710 = vmatmul.mubr.f32.gmra.mxu0 %v522
    %v711 = vpop.f32.mrf.mxu0
    %v712 = vadd.f32 %v476, %v711
    %v713 = vpop.f32.mrf.mxu0
    %714 = vmatprep.mubr.f32.mxu0 0.0
    %715 = vmatmul.mubr.f32.gmra.mxu0 %v525
    %v716 = vpop.f32.mrf.mxu0
    %v717 = vadd.f32 %v476, %v716
    %v718 = vpop.f32.mrf.mxu0
    %719 = vmatprep.mubr.f32.mxu0 0.0
    %720 = vmatmul.mubr.f32.gmra.mxu0 %v528
    %v721 = vpop.f32.mrf.mxu0
    %v722 = vadd.f32 %v476, %v721
    %v723 = vpop.f32.mrf.mxu0
    %724 = vmatprep.mubr.f32.mxu0 0.0
    %725 = vmatmul.mubr.f32.gmra.mxu0 %v531
    %v726 = vpop.f32.mrf.mxu0
    %v727 = vadd.f32 %v476, %v726
    %v728 = vpop.f32.mrf.mxu0
    %729 = vmatprep.mubr.f32.mxu0 0.0
    %730 = vmatmul.mubr.f32.gmra.mxu0 %v534
    %v731 = vpop.f32.mrf.mxu0
    %v732 = vadd.f32 %v476, %v731
    %v733 = vpop.f32.mrf.mxu0
    %734 = vmatprep.mubr.f32.mxu0 0.0
    %735 = vmatmul.mubr.f32.gmra.mxu0 %v537
    %v736 = vpop.f32.mrf.mxu0
    %v737 = vadd.f32 %v476, %v736
    %v738 = vpop.f32.mrf.mxu0
    %739 = vmatprep.mubr.f32.mxu0 0.0
    %740 = vmatmul.mubr.f32.gmra.mxu0 %v540
    %v741 = vpop.f32.mrf.mxu0
    %v742 = vadd.f32 %v476, %v741
    %v743 = vpop.f32.mrf.mxu0
    %744 = vmatprep.mubr.f32.mxu0 0.0
    %745 = vmatmul.mubr.f32.gmra.mxu0 %v543
    %v746 = vpop.f32.mrf.mxu0
    %v747 = vadd.f32 %v476, %v746
    %v748 = vpop.f32.mrf.mxu0
    %749 = vmatprep.mubr.f32.mxu0 0.0
    %750 = vmatmul.mubr.f32.gmra.mxu0 %v546
    %v751 = vpop.f32.mrf.mxu0
    %v752 = vadd.f32 %v476, %v751
    %v753 = vpop.f32.mrf.mxu0
    %754 = vmatprep.mubr.f32.mxu0 0.0
    %755 = vmatmul.mubr.f32.gmra.mxu0 %v549
    %v756 = vpop.f32.mrf.mxu0
    %v757 = vadd.f32 %v476, %v756
    %v758 = vpop.f32.mrf.mxu0
    %759 = vmatprep.mubr.f32.mxu0 0.0
    %760 = vmatmul.mubr.f32.gmra.mxu0 %v552
    %v761 = vpop.f32.mrf.mxu0
    %v762 = vadd.f32 %v476, %v761
    %v763 = vpop.f32.mrf.mxu0
    %764 = vmatprep.mubr.f32.mxu0 0.0
    %765 = vmatmul.mubr.f32.gmra.mxu0 %v555
    %v766 = vpop.f32.mrf.mxu0
    %v767 = vadd.f32 %v476, %v766
    %v768 = vpop.f32.mrf.mxu0
    %769 = vmatprep.mubr.f32.mxu0 0.0
    %770 = vmatmul.mubr.f32.gmra.mxu0 %v558
    %v771 = vpop.f32.mrf.mxu0
    %v772 = vadd.f32 %v476, %v771
    %v773 = vpop.f32.mrf.mxu0
    %774 = vmatprep.mubr.f32.mxu0 0.0
    %775 = vmatmul.mubr.f32.gmra.mxu0 %v561
    %v776 = vpop.f32.mrf.mxu0
    %v777 = vadd.f32 %v476, %v776
    %v778 = vpop.f32.mrf.mxu0
    %779 = vmatprep.mubr.f32.mxu0 0.0
    %780 = vmatmul.mubr.f32.gmra.mxu0 %v564
    %v781 = vpop.f32.mrf.mxu0
    %v782 = vadd.f32 %v476, %v781
    %v783 = vpop.f32.mrf.mxu0
    %784 = vmatprep.mubr.f32.mxu0 0.0
    %785 = vmatmul.mubr.f32.gmra.mxu0 %v567
    %v786 = vpop.f32.mrf.mxu0
    %v787 = vadd.f32 %v476, %v786
    %v788 = vpop.f32.mrf.mxu0
    %789 = vmatprep.mubr.f32.mxu0 0.0
    %790 = vmatmul.mubr.f32.gmra.mxu0 %v570
    %v791 = vpop.f32.mrf.mxu0
    %v792 = vadd.f32 %v476, %v791
    %v793 = vpop.f32.mrf.mxu0
    %794 = vmatprep.mubr.f32.mxu0 0.0
    %795 = vmatmul.mubr.f32.gmra.mxu0 %v573
    %v796 = vpop.f32.mrf.mxu0
    %v797 = vadd.f32 %v476, %v796
    %v798 = vpop.f32.mrf.mxu0
    %799 = vdwg.mxu0
    %v800 = vmax.f32 %v642, 0.0
    %v801 = vmax.f32 %v647, 0.0
    %v802 = vmax.f32 %v652, 0.0
    %v803 = vmax.f32 %v657, 0.0
    %v804 = vmax.f32 %v662, 0.0
    %v805 = vmax.f32 %v667, 0.0
    %v806 = vmax.f32 %v672, 0.0
    %v807 = vmax.f32 %v677, 0.0
    %v808 = vmax.f32 %v682, 0.0
    %v809 = vmax.f32 %v687, 0.0
    %v810 = vmax.f32 %v692, 0.0
    %v811 = vmax.f32 %v697, 0.0
    %v812 = vmax.f32 %v702, 0.0
    %v813 = vmax.f32 %v707, 0.0
    %v814 = vmax.f32 %v712, 0.0
    %v815 = vmax.f32 %v717, 0.0
    %v816 = vmax.f32 %v722, 0.0
    %v817 = vmax.f32 %v727, 0.0
    %v818 = vmax.f32 %v732, 0.0
    %v819 = vmax.f32 %v737, 0.0
    %v820 = vmax.f32 %v742, 0.0
    %v821 = vmax.f32 %v747, 0.0
    %v822 = vmax.f32 %v752, 0.0
    %v823 = vmax.f32 %v757, 0.0
    %v824 = vmax.f32 %v762, 0.0
    %v825 = vmax.f32 %v767, 0.0
    %v826 = vmax.f32 %v772, 0.0
    %v827 = vmax.f32 %v777, 0.0
    %v828 = vmax.f32 %v782, 0.0
    %v829 = vmax.f32 %v787, 0.0
    %v830 = vmax.f32 %v792, 0.0
    %v831 = vmax.f32 %v797, 0.0
    %v832 = vld [vmem:[#allocation5] sm:$0xff]
    %v833 = vld [vmem:[#allocation5 + $0x8] sm:$0xff]
    %v834 = vld [vmem:[#allocation5 + $0x10] sm:$0xff]
    %v835 = vld [vmem:[#allocation5 + $0x18] sm:$0xff]
    %v837 = vsel %vm478, %v800, 0
    %v840 = vsel %vm478, %v801, 0
    %v843 = vsel %vm478, %v802, 0
    %v846 = vsel %vm478, %v803, 0
    %v849 = vsel %vm478, %v804, 0
    %v852 = vsel %vm478, %v805, 0
    %v855 = vsel %vm478, %v806, 0
    %v858 = vsel %vm478, %v807, 0
    %v861 = vsel %vm478, %v808, 0
    %v864 = vsel %vm478, %v809, 0
    %v867 = vsel %vm478, %v810, 0
    %v870 = vsel %vm478, %v811, 0
    %v873 = vsel %vm478, %v812, 0
    %v876 = vsel %vm478, %v813, 0
    %v879 = vsel %vm478, %v814, 0
    %v882 = vsel %vm478, %v815, 0
    %v885 = vsel %vm478, %v816, 0
    %v888 = vsel %vm478, %v817, 0
    %v891 = vsel %vm478, %v818, 0
    %v894 = vsel %vm478, %v819, 0
    %v897 = vsel %vm478, %v820, 0
    %v900 = vsel %vm478, %v821, 0
    %v903 = vsel %vm478, %v822, 0
    %v906 = vsel %vm478, %v823, 0
    %v909 = vsel %vm478, %v824, 0
    %v912 = vsel %vm478, %v825, 0
    %v915 = vsel %vm478, %v826, 0
    %v918 = vsel %vm478, %v827, 0
    %v921 = vsel %vm478, %v828, 0
    %v924 = vsel %vm478, %v829, 0
    %v927 = vsel %vm478, %v830, 0
    %v930 = vsel %vm478, %v831, 0
    %932 = vmatprep.subr.mxu0 0.0
    %933 = vmatpush1.msra.mxu0 0.0
    %934 = vmatprep.subr.mxu0 0.0
    %935 = vmatpush1.msra.mxu0 0.0
    %936 = vmatprep.subr.mxu0 0.0
    %937 = vmatpush1.msra.mxu0 0.0
    %938 = vmatprep.subr.mxu0 0.0
    %939 = vmatpush1.msra.mxu0 0.0
    %940 = vmatprep.subr.mxu0 0.0
    %941 = vmatpush1.msra.mxu0 0.0
    %942 = vmatprep.subr.mxu0 0.0
    %943 = vmatpush1.msra.mxu0 0.0
    %944 = vmatprep.subr.mxu0 0.0
    %945 = vmatpush1.msra.mxu0 0.0
    %946 = vmatprep.subr.mxu0 0.0
    %947 = vmatpush1.msra.mxu0 0.0
    %948 = vmatprep.subr.mxu0 0.0
    %949 = vmatpush1.msra.mxu0 0.0
    %950 = vmatprep.subr.mxu0 0.0
    %951 = vmatpush1.msra.mxu0 0.0
    %952 = vmatprep.subr.mxu0 0.0
    %953 = vmatpush1.msra.mxu0 0.0
    %954 = vmatprep.subr.mxu0 0.0
    %955 = vmatpush1.msra.mxu0 0.0
    %956 = vmatprep.subr.mxu0 0.0
    %957 = vmatpush1.msra.mxu0 %v835
    %958 = vmatprep.subr.mxu0 0.0
    %959 = vmatpush1.msra.mxu0 %v834
    %960 = vmatprep.subr.mxu0 0.0
    %961 = vmatpush1.msra.mxu0 %v833
    %962 = vmatprep.subr.mxu0 0.0
    %963 = vmatpush1.msra.mxu0 %v832
    %964 = vmatprep.subr.mxu0 0.0
    %965 = vmatpush2.msra.mxu0 0.0
    %966 = vmatprep.subr.mxu0 0.0
    %967 = vmatpush2.msra.mxu0 0.0
    %968 = vmatprep.subr.mxu0 0.0
    %969 = vmatpush2.msra.mxu0 0.0
    %970 = vmatprep.subr.mxu0 0.0
    %971 = vmatpush2.msra.mxu0 0.0
    %972 = vmatprep.subr.mxu0 0.0
    %973 = vmatpush2.msra.mxu0 0.0
    %974 = vmatprep.subr.mxu0 0.0
    %975 = vmatpush2.msra.mxu0 0.0
    %976 = vmatprep.subr.mxu0 0.0
    %977 = vmatpush2.msra.mxu0 0.0
    %978 = vmatprep.subr.mxu0 0.0
    %979 = vmatpush2.msra.mxu0 0.0
    %980 = vmatprep.subr.mxu0 0.0
    %981 = vmatpush2.msra.mxu0 0.0
    %982 = vmatprep.subr.mxu0 0.0
    %983 = vmatpush2.msra.mxu0 0.0
    %984 = vmatprep.subr.mxu0 0.0
    %985 = vmatpush2.msra.mxu0 0.0
    %986 = vmatprep.subr.mxu0 0.0
    %987 = vmatpush2.msra.mxu0 0.0
    %988 = vmatprep.subr.mxu0 0.0
    %989 = vmatpush2.msra.mxu0 0.0
    %990 = vmatprep.subr.mxu0 0.0
    %991 = vmatpush2.msra.mxu0 0.0
    %992 = vmatprep.subr.mxu0 0.0
    %993 = vmatpush2.msra.mxu0 0.0
    %994 = vmatprep.subr.mxu0 0.0
    %995 = vmatpush2.msra.mxu0 0.0
    %996 = vmatprep.mubr.f32.mxu0 0.0
    %997 = vmatmul.mubr.f32.gmra.mxu0 %v837
    %v998 = vpop.f32.mrf.mxu0
    %v999 = vadd.f32 0.0, %v998
    %v1000 = vpop.f32.mrf.mxu0
    %1001 = vmatprep.mubr.f32.mxu0 0.0
    %1002 = vmatmul.mubr.f32.gmra.mxu0 %v840
    %v1003 = vpop.f32.mrf.mxu0
    %v1004 = vadd.f32 0.0, %v1003
    %v1005 = vpop.f32.mrf.mxu0
    %1006 = vmatprep.mubr.f32.mxu0 0.0
    %1007 = vmatmul.mubr.f32.gmra.mxu0 %v843
    %v1008 = vpop.f32.mrf.mxu0
    %v1009 = vadd.f32 0.0, %v1008
    %v1010 = vpop.f32.mrf.mxu0
    %1011 = vmatprep.mubr.f32.mxu0 0.0
    %1012 = vmatmul.mubr.f32.gmra.mxu0 %v846
    %v1013 = vpop.f32.mrf.mxu0
    %v1014 = vadd.f32 0.0, %v1013
    %v1015 = vpop.f32.mrf.mxu0
    %1016 = vmatprep.mubr.f32.mxu0 0.0
    %1017 = vmatmul.mubr.f32.gmra.mxu0 %v849
    %v1018 = vpop.f32.mrf.mxu0
    %v1019 = vadd.f32 0.0, %v1018
    %v1020 = vpop.f32.mrf.mxu0
    %1021 = vmatprep.mubr.f32.mxu0 0.0
    %1022 = vmatmul.mubr.f32.gmra.mxu0 %v852
    %v1023 = vpop.f32.mrf.mxu0
    %v1024 = vadd.f32 0.0, %v1023
    %v1025 = vpop.f32.mrf.mxu0
    %1026 = vmatprep.mubr.f32.mxu0 0.0
    %1027 = vmatmul.mubr.f32.gmra.mxu0 %v855
    %v1028 = vpop.f32.mrf.mxu0
    %v1029 = vadd.f32 0.0, %v1028
    %v1030 = vpop.f32.mrf.mxu0
    %1031 = vmatprep.mubr.f32.mxu0 0.0
    %1032 = vmatmul.mubr.f32.gmra.mxu0 %v858
    %v1033 = vpop.f32.mrf.mxu0
    %v1034 = vadd.f32 0.0, %v1033
    %v1035 = vpop.f32.mrf.mxu0
    %1036 = vmatprep.mubr.f32.mxu0 0.0
    %1037 = vmatmul.mubr.f32.gmra.mxu0 %v861
    %v1038 = vpop.f32.mrf.mxu0
    %v1039 = vadd.f32 0.0, %v1038
    %v1040 = vpop.f32.mrf.mxu0
    %1041 = vmatprep.mubr.f32.mxu0 0.0
    %1042 = vmatmul.mubr.f32.gmra.mxu0 %v864
    %v1043 = vpop.f32.mrf.mxu0
    %v1044 = vadd.f32 0.0, %v1043
    %v1045 = vpop.f32.mrf.mxu0
    %1046 = vmatprep.mubr.f32.mxu0 0.0
    %1047 = vmatmul.mubr.f32.gmra.mxu0 %v867
    %v1048 = vpop.f32.mrf.mxu0
    %v1049 = vadd.f32 0.0, %v1048
    %v1050 = vpop.f32.mrf.mxu0
    %1051 = vmatprep.mubr.f32.mxu0 0.0
    %1052 = vmatmul.mubr.f32.gmra.mxu0 %v870
    %v1053 = vpop.f32.mrf.mxu0
    %v1054 = vadd.f32 0.0, %v1053
    %v1055 = vpop.f32.mrf.mxu0
    %1056 = vmatprep.mubr.f32.mxu0 0.0
    %1057 = vmatmul.mubr.f32.gmra.mxu0 %v873
    %v1058 = vpop.f32.mrf.mxu0
    %v1059 = vadd.f32 0.0, %v1058
    %v1060 = vpop.f32.mrf.mxu0
    %1061 = vmatprep.mubr.f32.mxu0 0.0
    %1062 = vmatmul.mubr.f32.gmra.mxu0 %v876
    %v1063 = vpop.f32.mrf.mxu0
    %v1064 = vadd.f32 0.0, %v1063
    %v1065 = vpop.f32.mrf.mxu0
    %1066 = vmatprep.mubr.f32.mxu0 0.0
    %1067 = vmatmul.mubr.f32.gmra.mxu0 %v879
    %v1068 = vpop.f32.mrf.mxu0
    %v1069 = vadd.f32 0.0, %v1068
    %v1070 = vpop.f32.mrf.mxu0
    %1071 = vmatprep.mubr.f32.mxu0 0.0
    %1072 = vmatmul.mubr.f32.gmra.mxu0 %v882
    %v1073 = vpop.f32.mrf.mxu0
    %v1074 = vadd.f32 0.0, %v1073
    %v1075 = vpop.f32.mrf.mxu0
    %1076 = vmatprep.mubr.f32.mxu0 0.0
    %1077 = vmatmul.mubr.f32.gmra.mxu0 %v885
    %v1078 = vpop.f32.mrf.mxu0
    %v1079 = vadd.f32 0.0, %v1078
    %v1080 = vpop.f32.mrf.mxu0
    %1081 = vmatprep.mubr.f32.mxu0 0.0
    %1082 = vmatmul.mubr.f32.gmra.mxu0 %v888
    %v1083 = vpop.f32.mrf.mxu0
    %v1084 = vadd.f32 0.0, %v1083
    %v1085 = vpop.f32.mrf.mxu0
    %1086 = vmatprep.mubr.f32.mxu0 0.0
    %1087 = vmatmul.mubr.f32.gmra.mxu0 %v891
    %v1088 = vpop.f32.mrf.mxu0
    %v1089 = vadd.f32 0.0, %v1088
    %v1090 = vpop.f32.mrf.mxu0
    %1091 = vmatprep.mubr.f32.mxu0 0.0
    %1092 = vmatmul.mubr.f32.gmra.mxu0 %v894
    %v1093 = vpop.f32.mrf.mxu0
    %v1094 = vadd.f32 0.0, %v1093
    %v1095 = vpop.f32.mrf.mxu0
    %1096 = vmatprep.mubr.f32.mxu0 0.0
    %1097 = vmatmul.mubr.f32.gmra.mxu0 %v897
    %v1098 = vpop.f32.mrf.mxu0
    %v1099 = vadd.f32 0.0, %v1098
    %v1100 = vpop.f32.mrf.mxu0
    %1101 = vmatprep.mubr.f32.mxu0 0.0
    %1102 = vmatmul.mubr.f32.gmra.mxu0 %v900
    %v1103 = vpop.f32.mrf.mxu0
    %v1104 = vadd.f32 0.0, %v1103
    %v1105 = vpop.f32.mrf.mxu0
    %1106 = vmatprep.mubr.f32.mxu0 0.0
    %1107 = vmatmul.mubr.f32.gmra.mxu0 %v903
    %v1108 = vpop.f32.mrf.mxu0
    %v1109 = vadd.f32 0.0, %v1108
    %v1110 = vpop.f32.mrf.mxu0
    %1111 = vmatprep.mubr.f32.mxu0 0.0
    %1112 = vmatmul.mubr.f32.gmra.mxu0 %v906
    %v1113 = vpop.f32.mrf.mxu0
    %v1114 = vadd.f32 0.0, %v1113
    %v1115 = vpop.f32.mrf.mxu0
    %1116 = vmatprep.mubr.f32.mxu0 0.0
    %1117 = vmatmul.mubr.f32.gmra.mxu0 %v909
    %v1118 = vpop.f32.mrf.mxu0
    %v1119 = vadd.f32 0.0, %v1118
    %v1120 = vpop.f32.mrf.mxu0
    %1121 = vmatprep.mubr.f32.mxu0 0.0
    %1122 = vmatmul.mubr.f32.gmra.mxu0 %v912
    %v1123 = vpop.f32.mrf.mxu0
    %v1124 = vadd.f32 0.0, %v1123
    %v1125 = vpop.f32.mrf.mxu0
    %1126 = vmatprep.mubr.f32.mxu0 0.0
    %1127 = vmatmul.mubr.f32.gmra.mxu0 %v915
    %v1128 = vpop.f32.mrf.mxu0
    %v1129 = vadd.f32 0.0, %v1128
    %v1130 = vpop.f32.mrf.mxu0
    %1131 = vmatprep.mubr.f32.mxu0 0.0
    %1132 = vmatmul.mubr.f32.gmra.mxu0 %v918
    %v1133 = vpop.f32.mrf.mxu0
    %v1134 = vadd.f32 0.0, %v1133
    %v1135 = vpop.f32.mrf.mxu0
    %1136 = vmatprep.mubr.f32.mxu0 0.0
    %1137 = vmatmul.mubr.f32.gmra.mxu0 %v921
    %v1138 = vpop.f32.mrf.mxu0
    %v1139 = vadd.f32 0.0, %v1138
    %v1140 = vpop.f32.mrf.mxu0
    %1141 = vmatprep.mubr.f32.mxu0 0.0
    %1142 = vmatmul.mubr.f32.gmra.mxu0 %v924
    %v1143 = vpop.f32.mrf.mxu0
    %v1144 = vadd.f32 0.0, %v1143
    %v1145 = vpop.f32.mrf.mxu0
    %1146 = vmatprep.mubr.f32.mxu0 0.0
    %1147 = vmatmul.mubr.f32.gmra.mxu0 %v927
    %v1148 = vpop.f32.mrf.mxu0
    %v1149 = vadd.f32 0.0, %v1148
    %v1150 = vpop.f32.mrf.mxu0
    %1151 = vmatprep.mubr.f32.mxu0 0.0
    %1152 = vmatmul.mubr.f32.gmra.mxu0 %v930
    %v1153 = vpop.f32.mrf.mxu0
    %v1154 = vadd.f32 0.0, %v1153
    %v1155 = vpop.f32.mrf.mxu0
    %1156 = vdwg.mxu0
    %v1157 = vld [vmem:[#allocation7] sm:$0xff]
    %v1158 = vld [vmem:[#allocation7 + $0x8] sm:$0xff]
    %v1159 = vadd.f32 %v999, %v1157
    %v1160 = vadd.f32 %v1004, %v1158
    %v1161 = vadd.f32 %v1009, %v1157
    %v1162 = vadd.f32 %v1014, %v1158
    %v1163 = vadd.f32 %v1019, %v1157
    %v1164 = vadd.f32 %v1024, %v1158
    %v1165 = vadd.f32 %v1029, %v1157
    %v1166 = vadd.f32 %v1034, %v1158
    %v1167 = vadd.f32 %v1039, %v1157
    %v1168 = vadd.f32 %v1044, %v1158
    %v1169 = vadd.f32 %v1049, %v1157
    %v1170 = vadd.f32 %v1054, %v1158
    %v1171 = vadd.f32 %v1059, %v1157
    %v1172 = vadd.f32 %v1064, %v1158
    %v1173 = vadd.f32 %v1069, %v1157
    %v1174 = vadd.f32 %v1074, %v1158
    %v1175 = vadd.f32 %v1079, %v1157
    %v1176 = vadd.f32 %v1084, %v1158
    %v1177 = vadd.f32 %v1089, %v1157
    %v1178 = vadd.f32 %v1094, %v1158
    %v1179 = vadd.f32 %v1099, %v1157
    %v1180 = vadd.f32 %v1104, %v1158
    %v1181 = vadd.f32 %v1109, %v1157
    %v1182 = vadd.f32 %v1114, %v1158
    %v1183 = vadd.f32 %v1119, %v1157
    %v1184 = vadd.f32 %v1124, %v1158
    %v1185 = vadd.f32 %v1129, %v1157
    %v1186 = vadd.f32 %v1134, %v1158
    %v1187 = vadd.f32 %v1139, %v1157
    %v1188 = vadd.f32 %v1144, %v1158
    %v1189 = vadd.f32 %v1149, %v1157
    %v1190 = vadd.f32 %v1154, %v1158
    %1191 = vst.msk [vmem:[#allocation8] sm:$0xff] %vm478, %v1159
    %1192 = vst.msk [vmem:[#allocation8 + $0x20] sm:$0xff] %vm478, %v1160
    %1195 = vrot.lane.b32.xlu0 %v1161, 32
    %v1196 = vpop.permute.xlu0 %1195
    %1197 = vrot.lane.b32.xlu0 %v1162, 32
    %v1198 = vpop.permute.xlu0 %1197
    %vm1201 = vcmask 523520
    %1202 = vst.msk [vmem:[#allocation8] sm:$0xff] %vm1201, %v1196
    %1203 = vst.msk [vmem:[#allocation8 + $0x20] sm:$0xff] %vm1201, %v1198
    %1206 = vrot.lane.b32.xlu0 %v1163, 64
    %v1207 = vpop.permute.xlu0 %1206
    %1208 = vrot.lane.b32.xlu0 %v1164, 64
    %v1209 = vpop.permute.xlu0 %1208
    %vm1212 = vcmask 785920
    %1213 = vst.msk [vmem:[#allocation8] sm:$0xff] %vm1212, %v1207
    %1214 = vst.msk [vmem:[#allocation8 + $0x20] sm:$0xff] %vm1212, %v1209
    %1217 = vrot.lane.b32.xlu0 %v1165, 96
    %v1218 = vpop.permute.xlu0 %1217
    %1219 = vrot.lane.b32.xlu0 %v1166, 96
    %v1220 = vpop.permute.xlu0 %1219
    %vm1223 = vcmask 1048320
    %1224 = vst.msk [vmem:[#allocation8] sm:$0xff] %vm1223, %v1218
    %1225 = vst.msk [vmem:[#allocation8 + $0x20] sm:$0xff] %vm1223, %v1220
    %1226 = vst.msk [vmem:[#allocation8 + $0x8] sm:$0xff] %vm478, %v1167
    %1227 = vst.msk [vmem:[#allocation8 + $0x28] sm:$0xff] %vm478, %v1168
    %1230 = vrot.lane.b32.xlu0 %v1169, 32
    %v1231 = vpop.permute.xlu0 %1230
    %1232 = vrot.lane.b32.xlu0 %v1170, 32
    %v1233 = vpop.permute.xlu0 %1232
    %1236 = vst.msk [vmem:[#allocation8 + $0x8] sm:$0xff] %vm1201, %v1231
    %1237 = vst.msk [vmem:[#allocation8 + $0x28] sm:$0xff] %vm1201, %v1233
    %1240 = vrot.lane.b32.xlu0 %v1171, 64
    %v1241 = vpop.permute.xlu0 %1240
    %1242 = vrot.lane.b32.xlu0 %v1172, 64
    %v1243 = vpop.permute.xlu0 %1242
    %1246 = vst.msk [vmem:[#allocation8 + $0x8] sm:$0xff] %vm1212, %v1241
    %1247 = vst.msk [vmem:[#allocation8 + $0x28] sm:$0xff] %vm1212, %v1243
    %1250 = vrot.lane.b32.xlu0 %v1173, 96
    %v1251 = vpop.permute.xlu0 %1250
    %1252 = vrot.lane.b32.xlu0 %v1174, 96
    %v1253 = vpop.permute.xlu0 %1252
    %1256 = vst.msk [vmem:[#allocation8 + $0x8] sm:$0xff] %vm1223, %v1251
    %1257 = vst.msk [vmem:[#allocation8 + $0x28] sm:$0xff] %vm1223, %v1253
    %1258 = vst.msk [vmem:[#allocation8 + $0x10] sm:$0xff] %vm478, %v1175
    %1259 = vst.msk [vmem:[#allocation8 + $0x30] sm:$0xff] %vm478, %v1176
    %1262 = vrot.lane.b32.xlu0 %v1177, 32
    %v1263 = vpop.permute.xlu0 %1262
    %1264 = vrot.lane.b32.xlu0 %v1178, 32
    %v1265 = vpop.permute.xlu0 %1264
    %1268 = vst.msk [vmem:[#allocation8 + $0x10] sm:$0xff] %vm1201, %v1263
    %1269 = vst.msk [vmem:[#allocation8 + $0x30] sm:$0xff] %vm1201, %v1265
    %1272 = vrot.lane.b32.xlu0 %v1179, 64
    %v1273 = vpop.permute.xlu0 %1272
    %1274 = vrot.lane.b32.xlu0 %v1180, 64
    %v1275 = vpop.permute.xlu0 %1274
    %1278 = vst.msk [vmem:[#allocation8 + $0x10] sm:$0xff] %vm1212, %v1273
    %1279 = vst.msk [vmem:[#allocation8 + $0x30] sm:$0xff] %vm1212, %v1275
    %1282 = vrot.lane.b32.xlu0 %v1181, 96
    %v1283 = vpop.permute.xlu0 %1282
    %1284 = vrot.lane.b32.xlu0 %v1182, 96
    %v1285 = vpop.permute.xlu0 %1284
    %1288 = vst.msk [vmem:[#allocation8 + $0x10] sm:$0xff] %vm1223, %v1283
    %1289 = vst.msk [vmem:[#allocation8 + $0x30] sm:$0xff] %vm1223, %v1285
    %1290 = vst.msk [vmem:[#allocation8 + $0x18] sm:$0xff] %vm478, %v1183
    %1291 = vst.msk [vmem:[#allocation8 + $0x38] sm:$0xff] %vm478, %v1184
    %1294 = vrot.lane.b32.xlu0 %v1185, 32
    %v1295 = vpop.permute.xlu0 %1294
    %1296 = vrot.lane.b32.xlu0 %v1186, 32
    %v1297 = vpop.permute.xlu0 %1296
    %1300 = vst.msk [vmem:[#allocation8 + $0x18] sm:$0xff] %vm1201, %v1295
    %1301 = vst.msk [vmem:[#allocation8 + $0x38] sm:$0xff] %vm1201, %v1297
    %1304 = vrot.lane.b32.xlu0 %v1187, 64
    %v1305 = vpop.permute.xlu0 %1304
    %1306 = vrot.lane.b32.xlu0 %v1188, 64
    %v1307 = vpop.permute.xlu0 %1306
    %1310 = vst.msk [vmem:[#allocation8 + $0x18] sm:$0xff] %vm1212, %v1305
    %1311 = vst.msk [vmem:[#allocation8 + $0x38] sm:$0xff] %vm1212, %v1307
    %1314 = vrot.lane.b32.xlu0 %v1189, 96
    %v1315 = vpop.permute.xlu0 %1314
    %1316 = vrot.lane.b32.xlu0 %v1190, 96
    %v1317 = vpop.permute.xlu0 %1316
    %1320 = vst.msk [vmem:[#allocation8 + $0x18] sm:$0xff] %vm1223, %v1315
    %1321 = vst.msk [vmem:[#allocation8 + $0x38] sm:$0xff] %vm1223, %v1317
    // Predicated region
    $region42: #{tpu_custom_call.1} parent=1 // pred_check
      _
    $region43: #{tpu_custom_call.1} parent=1 // pred_check_branch
      %1323 = sbr.rel (0) target = $region45
    $region44: #{tpu_custom_call.1} parent=1 // pred_region
      %s1325 = ssub.s32 1024, 1024
      %1326 = vsyncadd [#allocation4], %s1325
      %s1327 = sshll.u32 [#allocation8], 4
      %s1328 = int_to_ptr.vmem [resolvable:$true] %s1327
      %1333 = dma.vmem_to_hbm [thread:$0]  %s1328, 1024, %s7, [#allocation4], 512, 512, 32
    $region45: #{tpu_custom_call.1} parent=1 // pred_fallthru
      _
    // Predicated region
    $region46: #{tpu_custom_call.1} parent=1 // pred_check
      _
    $region47: #{tpu_custom_call.1} parent=1 // pred_check_branch
      %1335 = sbr.rel (0) target = $region49
    $region48: #{tpu_custom_call.1} parent=1 // pred_region
      %1336 = dma.done [#allocation4], 1024
    $region49: #{tpu_custom_call.1} parent=1 // pred_fallthru
      _
    %1337 = vsyncpa [#allocation3], 1
    %1338 = vsyncpa [#allocation6], 1
    %1339 = vsyncpa [#allocation4], 1

</llo_original>
